<compile_context>
chip_gen: v5e
topology: v5e:2x2
jax: 0.10.0
libtpu: 0.0.40
codegen_flags: <defaults>
</compile_context>

<pallas_src>
import jax
import jax.numpy as jnp
from jax.experimental import pallas as pl
from jax.experimental.pallas import tpu as pltpu


def _gelu_tanh(x):
    # tanh-approx GELU (EUP-friendly, avoids erf lowering concerns)
    c = jnp.float32(0.7978845608028654)  # sqrt(2/pi)
    return 0.5 * x * (1.0 + jnp.tanh(c * (x + 0.044715 * x * x * x)))


def _round_up(n, m):
    return ((n + m - 1) // m) * m


def text_encoder_kernel(cls_ref, w1_ref, b1_ref, w2_ref, b2_ref, out_ref):
    """One tile of classes: (pool folded into w1/b1) GEMM -> GELU -> GEMM -> L2 norm.

    cls_ref : [TC, Dp] bf16   class-token embeddings
    w1_ref  : [Dp, Hp] bf16   (= w1 / L, zero-padded)
    b1_ref  : [1, Hp]  f32    (= b1 + (sum(prefix)/L) @ w1, zero-padded)
    w2_ref  : [Hp, Ep] bf16
    b2_ref  : [1, Ep]  f32
    out_ref : [TC, Ep] f32    L2-normalized class embeddings
    """
    h = jnp.dot(cls_ref[...], w1_ref[...],
                preferred_element_type=jnp.float32)            # [TC, Hp] f32 acc
    h = _gelu_tanh(h + b1_ref[...])

    o = jnp.dot(h.astype(jnp.bfloat16), w2_ref[...],
                preferred_element_type=jnp.float32)            # [TC, Ep] f32 acc
    o = o + b2_ref[...]

    inv_norm = jax.lax.rsqrt(jnp.sum(o * o, axis=-1, keepdims=True) + 1e-12)
    out_ref[...] = o * inv_norm


def text_prefix_forward(prefix, class_ids, class_emb_table, w1, b1, w2, b2,
                        *, class_tile=128):
    """Forward pass of TextPrefixModel with the synthetic text encoder.

    prefix          : [P, D] learned prefix tokens (nn.Parameter in torch)
    class_ids       : [C]    int32 class indices (the `classes` forward arg)
    class_emb_table : [V, D] class-name embedding table
    returns         : [C, E] normalized text embeddings (f32)
    """
    P, D = prefix.shape
    C = class_ids.shape[0]
    H = w1.shape[1]
    E = w2.shape[1]
    L = P + 1

    # ---- fold the prefix mean-pool into the first layer (plain-JAX glue, f32) ----
    prefix_mean = jnp.sum(prefix.astype(jnp.float32), axis=0) / jnp.float32(L)   # [D]
    w1_f32 = w1.astype(jnp.float32)
    b1_eff = b1.astype(jnp.float32) + prefix_mean @ w1_f32                       # [H]
    w1_eff = w1_f32 / jnp.float32(L)                                             # [D, H]

    cls_tok = class_emb_table[class_ids].astype(jnp.float32)                     # [C, D]
    # TODO(synk): fuse this gather into the kernel via scalar-prefetched class_ids
    # (pl.Element index_map) for very large vocab/class counts.

    # ---- pad to lane-dense / tile-friendly shapes ----
    Dp = _round_up(D, 128)
    Hp = _round_up(H, 128)
    Ep = _round_up(E, 128)
    Cp = _round_up(C, class_tile)

    cls_p = jnp.zeros((Cp, Dp), jnp.bfloat16).at[:C, :D].set(cls_tok.astype(jnp.bfloat16))
    w1_p = jnp.zeros((Dp, Hp), jnp.bfloat16).at[:D, :H].set(w1_eff.astype(jnp.bfloat16))
    b1_p = jnp.zeros((1, Hp), jnp.float32).at[0, :H].set(b1_eff)
    w2_p = jnp.zeros((Hp, Ep), jnp.bfloat16).at[:H, :E].set(w2.astype(jnp.bfloat16))
    b2_p = jnp.zeros((1, Ep), jnp.float32).at[0, :E].set(b2.astype(jnp.float32))

    grid = (Cp // class_tile,)

    out = pl.pallas_call(
        text_encoder_kernel,
        out_shape=jax.ShapeDtypeStruct((Cp, Ep), jnp.float32),
        grid_spec=pltpu.PrefetchScalarGridSpec(
            num_scalar_prefetch=0,
            grid=grid,
            in_specs=[
                # tile over classes; weights/biases are resident (constant index_map)
                pl.BlockSpec((class_tile, Dp), lambda i: (i, 0)),
                pl.BlockSpec((Dp, Hp), lambda i: (0, 0)),
                pl.BlockSpec((1, Hp), lambda i: (0, 0)),
                pl.BlockSpec((Hp, Ep), lambda i: (0, 0)),
                pl.BlockSpec((1, Ep), lambda i: (0, 0)),
            ],
            out_specs=pl.BlockSpec((class_tile, Ep), lambda i: (i, 0)),
        ),
        compiler_params=pltpu.CompilerParams(
            dimension_semantics=("parallel",)),
    )(cls_p, w1_p, b1_p, w2_p, b2_p)

    return out[:C, :E]


def _reference(prefix, class_ids, class_emb_table, w1, b1, w2, b2):
    # Unfolded f32 reference matching the original module semantics.
    cls_tok = class_emb_table[class_ids]
    C = class_ids.shape[0]
    P, D = prefix.shape
    tokens = jnp.concatenate(
        [jnp.broadcast_to(prefix[None, :, :], (C, P, D)),
         cls_tok[:, None, :]], axis=1)
    pooled = jnp.mean(tokens, axis=1)
    h = _gelu_tanh(pooled @ w1 + b1)
    o = h @ w2 + b2
    return o / jnp.sqrt(jnp.sum(o * o, axis=-1, keepdims=True) + 1e-12)


if __name__ == "__main__":
    # small shapes: P=4 prefix tokens, D=32 embed dim, H=64 hidden,
    # E=32 output embed dim, V=64 vocabulary of class names, C=256 classes queried
    # (C=256 with class_tile=128 -> grid=(2,) so both TCs of a v7x chip get work)
    P, D, H, E, V, C = 4, 32, 64, 32, 64, 256

    key = jax.random.PRNGKey(0)
    k_prefix, k_table, k_w1, k_b1, k_w2, k_b2, k_ids = jax.random.split(key, 7)

    prefix = 0.02 * jax.random.normal(k_prefix, (P, D), dtype=jnp.float32)   # nn.Parameter
    class_emb_table = 0.02 * jax.random.normal(k_table, (V, D), dtype=jnp.float32)
    w1 = jax.random.normal(k_w1, (D, H), dtype=jnp.float32) / jnp.sqrt(D)
    b1 = 0.01 * jax.random.normal(k_b1, (H,), dtype=jnp.float32)
    w2 = jax.random.normal(k_w2, (H, E), dtype=jnp.float32) / jnp.sqrt(H)
    b2 = 0.01 * jax.random.normal(k_b2, (E,), dtype=jnp.float32)

    class_ids = jax.random.randint(k_ids, (C,), 0, V, dtype=jnp.int32)  # `classes` arg

    out = text_prefix_forward(prefix, class_ids, class_emb_table, w1, b1, w2, b2)
    out = jax.block_until_ready(out)

    ref = _reference(prefix, class_ids, class_emb_table, w1, b1, w2, b2)
    assert out.shape == (C, E)
    # bf16 MXU inputs with f32 accumulation -> relaxed tolerance vs f32 reference
    assert jnp.allclose(out, ref, atol=2e-2, rtol=2e-2), "mismatch vs JAX reference"

    print("KERNEL_OK")
</pallas_src>

<mosaic_0001>
module attributes {stable_mosaic.version = 11 : i64} {
  func.func @text_encoder_kernel(%arg0: i32, %arg1: memref<128x128xbf16, #tpu.memory_space<vmem>>, %arg2: memref<128x128xbf16, #tpu.memory_space<vmem>>, %arg3: memref<1x128xf32, #tpu.memory_space<vmem>>, %arg4: memref<128x128xbf16, #tpu.memory_space<vmem>>, %arg5: memref<1x128xf32, #tpu.memory_space<vmem>>, %arg6: memref<128x128xf32, #tpu.memory_space<vmem>>) attributes {dimension_semantics = [#tpu.dimension_semantics<parallel>], iteration_bounds = array<i64: 2>, scalar_prefetch = 0 : i64, scratch_operands = 0 : i64, tpu.core_type = #tpu.core_type<tc>, window_params = [{transform_indices = @transform_0, window_bounds = array<i64: 128, 128>}, {pipeline_mode = #tpu.pipeline_mode<synchronous>, transform_indices = @transform_1, window_bounds = array<i64: 128, 128>}, {pipeline_mode = #tpu.pipeline_mode<synchronous>, transform_indices = @transform_2, window_bounds = array<i64: 1, 128>}, {pipeline_mode = #tpu.pipeline_mode<synchronous>, transform_indices = @transform_3, window_bounds = array<i64: 128, 128>}, {pipeline_mode = #tpu.pipeline_mode<synchronous>, transform_indices = @transform_4, window_bounds = array<i64: 1, 128>}, {transform_indices = @transform_5, window_bounds = array<i64: 128, 128>}]} {
    %c0 = arith.constant 0 : index
    %c0_0 = arith.constant 0 : index
    %0 = vector.load %arg1[%c0, %c0_0] : memref<128x128xbf16, #tpu.memory_space<vmem>>, vector<128x128xbf16>
    %c0_1 = arith.constant 0 : index
    %c0_2 = arith.constant 0 : index
    %1 = vector.load %arg2[%c0_1, %c0_2] : memref<128x128xbf16, #tpu.memory_space<vmem>>, vector<128x128xbf16>
    %cst = arith.constant dense<0.000000e+00> : vector<128x128xf32>
    %2 = tpu.matmul %0, %1, %cst {dimension_numbers = #tpu.dot_dimension_numbers<[1], [0], [0], [1], [0, 0, 1, 1], [], []>} : vector<128x128xbf16>, vector<128x128xbf16>, vector<128x128xf32> -> vector<128x128xf32>
    %c0_3 = arith.constant 0 : index
    %c0_4 = arith.constant 0 : index
    %3 = vector.load %arg3[%c0_3, %c0_4] : memref<1x128xf32, #tpu.memory_space<vmem>>, vector<1x128xf32>
    %4 = vector.broadcast %3 : vector<1x128xf32> to vector<128x128xf32>
    %5 = arith.addf %2, %4 : vector<128x128xf32>
    %cst_5 = arith.constant 5.000000e-01 : f32
    %6 = vector.broadcast %cst_5 : f32 to vector<128x128xf32>
    %7 = arith.mulf %6, %5 : vector<128x128xf32>
    %cst_6 = arith.constant 4.471500e-02 : f32
    %8 = vector.broadcast %cst_6 : f32 to vector<128x128xf32>
    %9 = arith.mulf %8, %5 : vector<128x128xf32>
    %10 = arith.mulf %9, %5 : vector<128x128xf32>
    %11 = arith.mulf %10, %5 : vector<128x128xf32>
    %12 = arith.addf %5, %11 : vector<128x128xf32>
    %cst_7 = arith.constant 0.797884583 : f32
    %13 = vector.broadcast %cst_7 : f32 to vector<128x128xf32>
    %14 = arith.mulf %13, %12 : vector<128x128xf32>
    %15 = math.tanh %14 : vector<128x128xf32>
    %cst_8 = arith.constant 1.000000e+00 : f32
    %16 = vector.broadcast %cst_8 : f32 to vector<128x128xf32>
    %17 = arith.addf %16, %15 : vector<128x128xf32>
    %18 = arith.mulf %7, %17 : vector<128x128xf32>
    %19 = arith.truncf %18 : vector<128x128xf32> to vector<128x128xbf16>
    %c0_9 = arith.constant 0 : index
    %c0_10 = arith.constant 0 : index
    %20 = vector.load %arg4[%c0_9, %c0_10] : memref<128x128xbf16, #tpu.memory_space<vmem>>, vector<128x128xbf16>
    %cst_11 = arith.constant dense<0.000000e+00> : vector<128x128xf32>
    %21 = tpu.matmul %19, %20, %cst_11 {dimension_numbers = #tpu.dot_dimension_numbers<[1], [0], [0], [1], [0, 0, 1, 1], [], []>} : vector<128x128xbf16>, vector<128x128xbf16>, vector<128x128xf32> -> vector<128x128xf32>
    %c0_12 = arith.constant 0 : index
    %c0_13 = arith.constant 0 : index
    %22 = vector.load %arg5[%c0_12, %c0_13] : memref<1x128xf32, #tpu.memory_space<vmem>>, vector<1x128xf32>
    %23 = vector.broadcast %22 : vector<1x128xf32> to vector<128x128xf32>
    %24 = arith.addf %21, %23 : vector<128x128xf32>
    %25 = arith.mulf %24, %24 : vector<128x128xf32>
    %cst_14 = arith.constant dense<0.000000e+00> : vector<128xf32>
    %26 = vector.multi_reduction <add>, %25, %cst_14 [1] : vector<128x128xf32> to vector<128xf32>
    %27 = vector.shape_cast %26 : vector<128xf32> to vector<128x1xf32>
    %cst_15 = arith.constant 9.99999996E-13 : f32
    %28 = vector.broadcast %cst_15 : f32 to vector<128x1xf32>
    %29 = arith.addf %27, %28 : vector<128x1xf32>
    %30 = math.rsqrt %29 : vector<128x1xf32>
    %31 = vector.broadcast %30 : vector<128x1xf32> to vector<128x128xf32>
    %32 = arith.mulf %24, %31 : vector<128x128xf32>
    %c0_16 = arith.constant 0 : index
    %c0_17 = arith.constant 0 : index
    %33 = vector.load %arg6[%c0_16, %c0_17] : memref<128x128xf32, #tpu.memory_space<vmem>>, vector<128x128xf32>
    tpu.vector_store %arg6[%c0_16, %c0_17], %32 {strides = array<i32>} : memref<128x128xf32, #tpu.memory_space<vmem>>, vector<128x128xf32>,
    return
  }
  func.func @transform_0(%arg0: i32) -> (i32, i32) {
    %c0_i32 = arith.constant 0 : i32
    %c0_i32_0 = arith.constant 0 : i32
    return %arg0, %c0_i32 : i32, i32
  }
  func.func @transform_1(%arg0: i32) -> (i32, i32) {
    %c0_i32 = arith.constant 0 : i32
    %c0_i32_0 = arith.constant 0 : i32
    %c0_i32_1 = arith.constant 0 : i32
    return %c0_i32, %c0_i32_0 : i32, i32
  }
  func.func @transform_2(%arg0: i32) -> (i32, i32) {
    %c0_i32 = arith.constant 0 : i32
    %c0_i32_0 = arith.constant 0 : i32
    %c0_i32_1 = arith.constant 0 : i32
    return %c0_i32, %c0_i32_0 : i32, i32
  }
  func.func @transform_3(%arg0: i32) -> (i32, i32) {
    %c0_i32 = arith.constant 0 : i32
    %c0_i32_0 = arith.constant 0 : i32
    %c0_i32_1 = arith.constant 0 : i32
    return %c0_i32, %c0_i32_0 : i32, i32
  }
  func.func @transform_4(%arg0: i32) -> (i32, i32) {
    %c0_i32 = arith.constant 0 : i32
    %c0_i32_0 = arith.constant 0 : i32
    %c0_i32_1 = arith.constant 0 : i32
    return %c0_i32, %c0_i32_0 : i32, i32
  }
  func.func @transform_5(%arg0: i32) -> (i32, i32) {
    %c0_i32 = arith.constant 0 : i32
    %c0_i32_0 = arith.constant 0 : i32
    return %arg0, %c0_i32 : i32, i32
  }
}

</mosaic_0001>

<llo_original>
// kernel: tpu_custom_call.1
$region0: #{tpu_custom_call.1}
  #allocation0 [shape = 'u32[]', space=smem, size = 0x4, offset = 0x4, fixed_abs, tag = 'smem constant byte address 0x4 - core index']
  #allocation1 [shape = 'u32[72,128]{1,0:T(1,128)}', space=vmem, size = 0x9000, scoped, tag = 'internal scratch']
  %s0 = inlined_call_operand.hbm [shape: bf16[256,128], index: 0, kind: input, shape index: {}]
  %s1 = inlined_call_operand.hbm [shape: bf16[128,128], index: 1, kind: input, shape index: {}]
  %s2 = inlined_call_operand.vmem [shape: f32[1,128], index: 2, kind: input, shape index: {}]
  %s3 = inlined_call_operand.hbm [shape: bf16[128,128], index: 3, kind: input, shape index: {}]
  %s4 = inlined_call_operand.vmem [shape: f32[1,128], index: 4, kind: input, shape index: {}]
  %s5 = inlined_call_operand.hbm [shape: f32[256,128], index: 5, kind: output, shape index: {}]
  %s6 = sld [smem:[#allocation0]]
  $region65: #{tpu_custom_call.1} parent=0
    _
  %s8 = ssub.s32 1, %s6
  %s9 = scalar_select 0, %s8, %s6
  $region1: #{tpu_custom_call.1} parent=0
    #allocation2 [shape = 'u8[65536]{0}', space=vmem, size = 0x10000, scoped, tag = 'input window, operand 0']
    #allocation3 [shape = 's32[2]{0}', space=sflag, size = 0x8, scoped, tag = 'scoped memory for tpu_custom_call.1']
    #allocation4 [shape = 's32[2]{0}', space=sflag, size = 0x8, scoped, tag = 'scoped memory for tpu_custom_call.1']
    #allocation5 [shape = 'u8[32768]{0}', space=vmem, size = 0x8000, scoped, tag = 'input window, operand 1, single buffered']
    #allocation6 [shape = 's32[1]{0}', space=sflag, size = 0x4, scoped, tag = 'scoped memory for tpu_custom_call.1']
    #allocation7 [shape = 'u8[32768]{0}', space=vmem, size = 0x8000, scoped, tag = 'input window, operand 3, single buffered']
    #allocation8 [shape = 'u8[131072]{0}', space=vmem, size = 0x20000, scoped, tag = 'output window, operand 0']
    %10 = vsyncpa [#allocation3], 0
    %s11 = scalar_lea.sflag [#allocation3], 1
    %12 = vsyncpa %s11, 0
    %13 = vsyncpa [#allocation6], 0
    %14 = vsyncpa [#allocation4], 0
    %s15 = scalar_lea.sflag [#allocation4], 1
    %16 = vsyncpa %s15, 0
    loop: start=0, step=1, limit=4
    $region2: #{tpu_custom_call.1} parent=1 // loop_pre_header
      _
    $region3: #{tpu_custom_call.1} parent=1 // loop_header
      %s18 = sphi 0, %s22
      %p19 = scmp.ge.s32.totalorder %s18, 4
      %s28 = sphi 0, %s30
      %s31 = sphi 0, %s28
      %s32 = sphi 0, %s31
      %s48 = sphi 0, %s32
      %s52 = sphi 0, %s52
      %s54 = sphi 0, %s52
      %s55 = sphi 0, %s54
      %s69 = sphi 0, %s55
      %s73 = sphi 0, %s73
      %s75 = sphi 0, %s73
      %s76 = sphi 0, %s75
      %s90 = sphi 0, %s76
      %s94 = sphi 0, %s94
      %s96 = sphi 0, %s94
      %s97 = sphi 0, %s96
      %s111 = sphi 0, %s97
      %s115 = sphi 0, %s115
      %s117 = sphi 0, %s115
      %s118 = sphi 0, %s117
      %s132 = sphi 0, %s118
      %s138 = sphi 0, %s140
      %s141 = sphi 0, %s138
      %s142 = sphi 0, %s141
      %s158 = sphi 0, %s142
    $region4: #{tpu_custom_call.1} parent=1 // loop_header_branch
      %21 = sbr.rel (%p19) target = $region8
    $region5: #{tpu_custom_call.1} parent=1 // loop_body
      %s23 = ssub.s32 %s18, 1
      %s24 = ssub.s32 %s18, 2
      %s25 = sadd.s32 %s18, 1
      %s26 = ssub.s32 %s18, %s25
      %p27 = scmp.eq.s32.totalorder %s26, 0
      %s29 = sadd.s32 %s28, 1
      %s30 = scalar_select %p27, %s28, %s29
      %p33 = pneg %p27
      %p34 = scmp.eq.s32.totalorder %s18, 1
      %p35 = por %p33, %p34
      %p36 = scmp.ne.s32.totalorder %s28, %s31
      %p37 = scmp.eq.s32.totalorder %s18, 0
      %p38 = por %p36, %p37
      %p39 = scmp.ne.s32.totalorder %s28, %s31
      %p40 = scmp.eq.s32.totalorder %s23, 1
      %p41 = por %p39, %p40
      %p42 = scmp.ne.s32.totalorder %s31, %s32
      %p43 = scmp.eq.s32.totalorder %s23, 0
      %p44 = por %p42, %p43
      %p45 = scmp.ne.s32.totalorder %s31, %s32
      %p46 = scmp.eq.s32.totalorder %s24, 1
      %p47 = por %p45, %p46
      %p49 = scmp.ne.s32.totalorder %s32, %s48
      %p50 = scmp.eq.s32.totalorder %s24, 0
      %p51 = por %p49, %p50
      %s53 = sadd.s32 %s52, 1
      %p56 = scmp.eq.s32.totalorder %s18, 1
      %p57 = scmp.ne.s32.totalorder %s52, %s54
      %p58 = scmp.eq.s32.totalorder %s18, 0
      %p59 = por %p57, %p58
      %p60 = scmp.ne.s32.totalorder %s52, %s54
      %p61 = scmp.eq.s32.totalorder %s23, 1
      %p62 = por %p60, %p61
      %p63 = scmp.ne.s32.totalorder %s54, %s55
      %p64 = scmp.eq.s32.totalorder %s23, 0
      %p65 = por %p63, %p64
      %p66 = scmp.ne.s32.totalorder %s54, %s55
      %p67 = scmp.eq.s32.totalorder %s24, 1
      %p68 = por %p66, %p67
      %p70 = scmp.ne.s32.totalorder %s55, %s69
      %p71 = scmp.eq.s32.totalorder %s24, 0
      %p72 = por %p70, %p71
      %s74 = sadd.s32 %s73, 1
      %p77 = scmp.eq.s32.totalorder %s18, 1
      %p78 = scmp.ne.s32.totalorder %s73, %s75
      %p79 = scmp.eq.s32.totalorder %s18, 0
      %p80 = por %p78, %p79
      %p81 = scmp.ne.s32.totalorder %s73, %s75
      %p82 = scmp.eq.s32.totalorder %s23, 1
      %p83 = por %p81, %p82
      %p84 = scmp.ne.s32.totalorder %s75, %s76
      %p85 = scmp.eq.s32.totalorder %s23, 0
      %p86 = por %p84, %p85
      %p87 = scmp.ne.s32.totalorder %s75, %s76
      %p88 = scmp.eq.s32.totalorder %s24, 1
      %p89 = por %p87, %p88
      %p91 = scmp.ne.s32.totalorder %s76, %s90
      %p92 = scmp.eq.s32.totalorder %s24, 0
      %p93 = por %p91, %p92
      %s95 = sadd.s32 %s94, 1
      %p98 = scmp.eq.s32.totalorder %s18, 1
      %p99 = scmp.ne.s32.totalorder %s94, %s96
      %p100 = scmp.eq.s32.totalorder %s18, 0
      %p101 = por %p99, %p100
      %p102 = scmp.ne.s32.totalorder %s94, %s96
      %p103 = scmp.eq.s32.totalorder %s23, 1
      %p104 = por %p102, %p103
      %p105 = scmp.ne.s32.totalorder %s96, %s97
      %p106 = scmp.eq.s32.totalorder %s23, 0
      %p107 = por %p105, %p106
      %p108 = scmp.ne.s32.totalorder %s96, %s97
      %p109 = scmp.eq.s32.totalorder %s24, 1
      %p110 = por %p108, %p109
      %p112 = scmp.ne.s32.totalorder %s97, %s111
      %p113 = scmp.eq.s32.totalorder %s24, 0
      %p114 = por %p112, %p113
      %s116 = sadd.s32 %s115, 1
      %p119 = scmp.eq.s32.totalorder %s18, 1
      %p120 = scmp.ne.s32.totalorder %s115, %s117
      %p121 = scmp.eq.s32.totalorder %s18, 0
      %p122 = por %p120, %p121
      %p123 = scmp.ne.s32.totalorder %s115, %s117
      %p124 = scmp.eq.s32.totalorder %s23, 1
      %p125 = por %p123, %p124
      %p126 = scmp.ne.s32.totalorder %s117, %s118
      %p127 = scmp.eq.s32.totalorder %s23, 0
      %p128 = por %p126, %p127
      %p129 = scmp.ne.s32.totalorder %s117, %s118
      %p130 = scmp.eq.s32.totalorder %s24, 1
      %p131 = por %p129, %p130
      %p133 = scmp.ne.s32.totalorder %s118, %s132
      %p134 = scmp.eq.s32.totalorder %s24, 0
      %p135 = por %p133, %p134
      %s136 = ssub.s32 %s18, %s25
      %p137 = scmp.eq.s32.totalorder %s136, 0
      %s139 = sadd.s32 %s138, 1
      %s140 = scalar_select %p137, %s138, %s139
      %p143 = pneg %p137
      %p144 = scmp.eq.s32.totalorder %s18, 1
      %p145 = por %p143, %p144
      %p146 = scmp.ne.s32.totalorder %s138, %s141
      %p147 = scmp.eq.s32.totalorder %s18, 0
      %p148 = por %p146, %p147
      %p149 = scmp.ne.s32.totalorder %s138, %s141
      %p150 = scmp.eq.s32.totalorder %s23, 1
      %p151 = por %p149, %p150
      %p152 = scmp.ne.s32.totalorder %s141, %s142
      %p153 = scmp.eq.s32.totalorder %s23, 0
      %p154 = por %p152, %p153
      %p155 = scmp.ne.s32.totalorder %s141, %s142
      %p156 = scmp.eq.s32.totalorder %s24, 1
      %p157 = por %p155, %p156
      %p159 = scmp.ne.s32.totalorder %s142, %s158
      %p160 = scmp.eq.s32.totalorder %s24, 0
      %p161 = por %p159, %p160
      %p162 = scmp.le.s32.totalorder 1, %s18
      %p163 = scmp.lt.s32.totalorder %s18, 3
      %p164 = pnand %p162, %p163
      %p165 = pneg %p164
      // Predicated region
      $region9: #{tpu_custom_call.1} parent=5 // pred_check
        _
      $region10: #{tpu_custom_call.1} parent=5 // pred_check_branch
        %167 = sbr.rel (%p164) target = $region12
      $region11: #{tpu_custom_call.1} parent=5 // pred_region
        %s168 = ssub.s32 %s18, 1
        // Predicated region
        $region13: #{tpu_custom_call.1} parent=11 // pred_check
          %p169 = pneg %p65
        $region14: #{tpu_custom_call.1} parent=11 // pred_check_branch
          %171 = sbr.rel (%p169) target = $region16
        $region15: #{tpu_custom_call.1} parent=11 // pred_region
          %173 = vsyncadd [#allocation6], 0
          %s174 = sshll.u32 %s1, 4
          %s175 = int_to_ptr.hbm [resolvable:$true] %s174
          %s176 = sshll.u32 [#allocation5], 4
          %s177 = int_to_ptr.vmem [resolvable:$true] %s176
          %182 = dma.hbm_to_vmem [thread:$0]  %s175, 1024, %s177, [#allocation6], 64, 64, 4
        $region16: #{tpu_custom_call.1} parent=11 // pred_fallthru
          _
        // Predicated region
        $region17: #{tpu_custom_call.1} parent=11 // pred_check
          %p183 = pneg %p86
        $region18: #{tpu_custom_call.1} parent=11 // pred_check_branch
          %185 = sbr.rel (%p183) target = $region20
        $region19: #{tpu_custom_call.1} parent=11 // pred_region
          _
        $region20: #{tpu_custom_call.1} parent=11 // pred_fallthru
          _
        // Predicated region
        $region21: #{tpu_custom_call.1} parent=11 // pred_check
          %p186 = pneg %p107
        $region22: #{tpu_custom_call.1} parent=11 // pred_check_branch
          %188 = sbr.rel (%p186) target = $region24
        $region23: #{tpu_custom_call.1} parent=11 // pred_region
          %190 = vsyncadd [#allocation6], 0
          %s191 = sshll.u32 %s3, 4
          %s192 = int_to_ptr.hbm [resolvable:$true] %s191
          %s193 = sshll.u32 [#allocation7], 4
          %s194 = int_to_ptr.vmem [resolvable:$true] %s193
          %199 = dma.hbm_to_vmem [thread:$0]  %s192, 1024, %s194, [#allocation6], 64, 64, 4
        $region24: #{tpu_custom_call.1} parent=11 // pred_fallthru
          _
        // Predicated region
        $region25: #{tpu_custom_call.1} parent=11 // pred_check
          %p200 = pneg %p128
        $region26: #{tpu_custom_call.1} parent=11 // pred_check_branch
          %202 = sbr.rel (%p200) target = $region28
        $region27: #{tpu_custom_call.1} parent=11 // pred_region
          _
        $region28: #{tpu_custom_call.1} parent=11 // pred_fallthru
          _
      $region12: #{tpu_custom_call.1} parent=5 // pred_fallthru
        _
      %p203 = scmp.lt.s32.totalorder %s18, 2
      // Predicated region
      $region29: #{tpu_custom_call.1} parent=5 // pred_check
        %p204 = pneg %p203
      $region30: #{tpu_custom_call.1} parent=5 // pred_check_branch
        %206 = sbr.rel (%p204) target = $region32
      $region31: #{tpu_custom_call.1} parent=5 // pred_region
        // Predicated region
        $region33: #{tpu_custom_call.1} parent=31 // pred_check
          %p207 = pneg %p38
        $region34: #{tpu_custom_call.1} parent=31 // pred_check_branch
          %209 = sbr.rel (%p207) target = $region36
        $region35: #{tpu_custom_call.1} parent=31 // pred_region
          %s210 = sand.u32 %s28, 1
          %s211 = scalar_lea.sflag [#allocation3], %s210
          %s212 = sand.u32 %s28, 1
          %s213 = smul.addr %s212, 64
          %s214 = scalar_lea.vmem [#allocation2], %s213
          %s215 = smul.u32 16, %s18
          %217 = vsyncadd %s211, 0
          %s218 = smul.addr %s215, 4
          %s219 = scalar_lea.hbm %s0, %s218
          %s220 = sshll.u32 %s219, 4
          %s221 = int_to_ptr.hbm [resolvable:$true] %s220
          %s222 = sshll.u32 %s214, 4
          %s223 = int_to_ptr.vmem [resolvable:$true] %s222
          %228 = dma.hbm_to_vmem [thread:$0]  %s221, 1024, %s223, %s211, 64, 64, 4
        $region36: #{tpu_custom_call.1} parent=31 // pred_fallthru
          _
      $region32: #{tpu_custom_call.1} parent=5 // pred_fallthru
        _
      %p229 = scmp.le.s32.totalorder 1, %s18
      %p230 = scmp.lt.s32.totalorder %s18, 3
      %p231 = pnand %p229, %p230
      %p232 = pneg %p231
      // Predicated region
      $region37: #{tpu_custom_call.1} parent=5 // pred_check
        _
      $region38: #{tpu_custom_call.1} parent=5 // pred_check_branch
        %234 = sbr.rel (%p231) target = $region40
      $region39: #{tpu_custom_call.1} parent=5 // pred_region
        %s235 = ssub.s32 %s18, 1
        %s236 = sand.u32 %s31, 1
        %s237 = scalar_lea.sflag [#allocation3], %s236
        %s238 = sand.u32 %s31, 1
        %s239 = smul.addr %s238, 64
        %s240 = scalar_lea.vmem [#allocation2], %s239
        // Predicated region
        $region41: #{tpu_custom_call.1} parent=39 // pred_check
          %p241 = pneg %p44
        $region42: #{tpu_custom_call.1} parent=39 // pred_check_branch
          %243 = sbr.rel (%p241) target = $region44
        $region43: #{tpu_custom_call.1} parent=39 // pred_region
          %245 = dma.done %s237, 1024
        $region44: #{tpu_custom_call.1} parent=39 // pred_fallthru
          _
        // Predicated region
        $region45: #{tpu_custom_call.1} parent=39 // pred_check
          %p246 = pneg %p65
        $region46: #{tpu_custom_call.1} parent=39 // pred_check_branch
          %248 = sbr.rel (%p246) target = $region48
        $region47: #{tpu_custom_call.1} parent=39 // pred_region
          %250 = dma.done [#allocation6], 1024
        $region48: #{tpu_custom_call.1} parent=39 // pred_fallthru
          _
        // Predicated region
        $region49: #{tpu_custom_call.1} parent=39 // pred_check
          %p251 = pneg %p107
        $region50: #{tpu_custom_call.1} parent=39 // pred_check_branch
          %253 = sbr.rel (%p251) target = $region52
        $region51: #{tpu_custom_call.1} parent=39 // pred_region
          %255 = dma.done [#allocation6], 1024
        $region52: #{tpu_custom_call.1} parent=39 // pred_fallthru
          _
        %s256 = sand.u32 %s31, 1
        %s257 = scalar_lea.sflag [#allocation3], %s256
        %s258 = sand.u32 %s31, 1
        %s259 = smul.addr %s258, 64
        %s260 = scalar_lea.vmem [#allocation2], %s259
        %p261 = pneg %p44
        %p262 = pneg %p41
        %p263 = pneg %p65
        %p264 = pneg %p62
        %p265 = pneg %p86
        %p266 = pneg %p83
        %p267 = pneg %p107
        %p268 = pneg %p104
        %p269 = pneg %p128
        %p270 = pneg %p125
        %p271 = pneg %p154
        %p272 = pneg %p151
        %s273 = sand.u32 %s141, 1
        %s274 = scalar_lea.sflag [#allocation4], %s273
        %s275 = sand.u32 %s141, 1
        %s276 = smul.addr %s275, 128
        %s277 = scalar_lea.vmem [#allocation8], %s276
        %s278 = smul.u32 16, %s23
        %s279 = smul.u32 16, %s23
        %v280 = vld [vmem:[%s240] sm:$0xf]
        %v281 = vld [vmem:[%s240 + $0x4] sm:$0xf]
        %v282 = vld [vmem:[%s240 + $0x8] sm:$0xf]
        %v283 = vld [vmem:[%s240 + $0xc] sm:$0xf]
        %v284 = vld [vmem:[%s240 + $0x10] sm:$0xf]
        %v285 = vld [vmem:[%s240 + $0x14] sm:$0xf]
        %v286 = vld [vmem:[%s240 + $0x18] sm:$0xf]
        %v287 = vld [vmem:[%s240 + $0x1c] sm:$0xf]
        %v288 = vld [vmem:[%s240 + $0x20] sm:$0xf]
        %v289 = vld [vmem:[%s240 + $0x24] sm:$0xf]
        %v290 = vld [vmem:[%s240 + $0x28] sm:$0xf]
        %v291 = vld [vmem:[%s240 + $0x2c] sm:$0xf]
        %v292 = vld [vmem:[%s240 + $0x30] sm:$0xf]
        %v293 = vld [vmem:[%s240 + $0x34] sm:$0xf]
        %v294 = vld [vmem:[%s240 + $0x38] sm:$0xf]
        %v295 = vld [vmem:[%s240 + $0x3c] sm:$0xf]
        %v296 = vld [vmem:[#allocation5] sm:$0xf]
        %v297 = vld [vmem:[#allocation5 + $0x4] sm:$0xf]
        %v298 = vld [vmem:[#allocation5 + $0x8] sm:$0xf]
        %v299 = vld [vmem:[#allocation5 + $0xc] sm:$0xf]
        %v300 = vld [vmem:[#allocation5 + $0x10] sm:$0xf]
        %v301 = vld [vmem:[#allocation5 + $0x14] sm:$0xf]
        %v302 = vld [vmem:[#allocation5 + $0x18] sm:$0xf]
        %v303 = vld [vmem:[#allocation5 + $0x1c] sm:$0xf]
        %v304 = vld [vmem:[#allocation5 + $0x20] sm:$0xf]
        %v305 = vld [vmem:[#allocation5 + $0x24] sm:$0xf]
        %v306 = vld [vmem:[#allocation5 + $0x28] sm:$0xf]
        %v307 = vld [vmem:[#allocation5 + $0x2c] sm:$0xf]
        %v308 = vld [vmem:[#allocation5 + $0x30] sm:$0xf]
        %v309 = vld [vmem:[#allocation5 + $0x34] sm:$0xf]
        %v310 = vld [vmem:[#allocation5 + $0x38] sm:$0xf]
        %v311 = vld [vmem:[#allocation5 + $0x3c] sm:$0xf]
        %v312 = vld [vmem:[%s2] sm:$0x1]
        %v314 = vperm.slane %v312, 0
        %v332 = vunpack.c.l.b16 %v280
        %v333 = vunpack.c.l.b16 %v281
        %v334 = vunpack.c.l.b16 %v282
        %v335 = vunpack.c.l.b16 %v283
        %v336 = vunpack.c.l.b16 %v284
        %v337 = vunpack.c.l.b16 %v285
        %v338 = vunpack.c.l.b16 %v286
        %v339 = vunpack.c.l.b16 %v287
        %v340 = vunpack.c.l.b16 %v288
        %v341 = vunpack.c.l.b16 %v289
        %v342 = vunpack.c.l.b16 %v290
        %v343 = vunpack.c.l.b16 %v291
        %v344 = vunpack.c.l.b16 %v292
        %v345 = vunpack.c.l.b16 %v293
        %v346 = vunpack.c.l.b16 %v294
        %v347 = vunpack.c.l.b16 %v295
        %v348 = vpack.c.b16 %v333, %v332
        %v349 = vpack.c.b16 %v335, %v334
        %v350 = vpack.c.b16 %v337, %v336
        %v351 = vpack.c.b16 %v339, %v338
        %v352 = vpack.c.b16 %v341, %v340
        %v353 = vpack.c.b16 %v343, %v342
        %v354 = vpack.c.b16 %v345, %v344
        %v355 = vpack.c.b16 %v347, %v346
        %v380 = vunpack.c.l.b16 %v296
        %v381 = vunpack.c.l.b16 %v297
        %v382 = vunpack.c.l.b16 %v298
        %v383 = vunpack.c.l.b16 %v299
        %v384 = vunpack.c.l.b16 %v300
        %v385 = vunpack.c.l.b16 %v301
        %v386 = vunpack.c.l.b16 %v302
        %v387 = vunpack.c.l.b16 %v303
        %v388 = vunpack.c.l.b16 %v304
        %v389 = vunpack.c.l.b16 %v305
        %v390 = vunpack.c.l.b16 %v306
        %v391 = vunpack.c.l.b16 %v307
        %v392 = vunpack.c.l.b16 %v308
        %v393 = vunpack.c.l.b16 %v309
        %v394 = vunpack.c.l.b16 %v310
        %v395 = vunpack.c.l.b16 %v311
        %v396 = vpack.c.b16 %v381, %v380
        %v397 = vpack.c.b16 %v383, %v382
        %v398 = vpack.c.b16 %v385, %v384
        %v399 = vpack.c.b16 %v387, %v386
        %v400 = vpack.c.b16 %v389, %v388
        %v401 = vpack.c.b16 %v391, %v390
        %v402 = vpack.c.b16 %v393, %v392
        %v403 = vpack.c.b16 %v395, %v394
        %412 = vmatpush.bf16.msra.mxu0 %v403
        %413 = vmatpush.bf16.msra.mxu0 %v402
        %414 = vmatpush.bf16.msra.mxu0 %v401
        %415 = vmatpush.bf16.msra.mxu0 %v400
        %416 = vmatpush.bf16.msra.mxu0 %v399
        %417 = vmatpush.bf16.msra.mxu0 %v398
        %418 = vmatpush.bf16.msra.mxu0 %v397
        %419 = vmatpush.bf16.msra.mxu0 %v396
        %420 = vmatmul.bf16.gmra.mxu0 %v348
        %v421 = vpop.f32.mrf.mxu0
        %v422 = vadd.f32 %v314, %v421
        %v423 = vpop.f32.mrf.mxu0
        %v424 = vadd.f32 %v314, %v423
        %425 = vmatmul.bf16.gmra.mxu0 %v349
        %v426 = vpop.f32.mrf.mxu0
        %v427 = vadd.f32 %v314, %v426
        %v428 = vpop.f32.mrf.mxu0
        %v429 = vadd.f32 %v314, %v428
        %430 = vmatmul.bf16.gmra.mxu0 %v350
        %v431 = vpop.f32.mrf.mxu0
        %v432 = vadd.f32 %v314, %v431
        %v433 = vpop.f32.mrf.mxu0
        %v434 = vadd.f32 %v314, %v433
        %435 = vmatmul.bf16.gmra.mxu0 %v351
        %v436 = vpop.f32.mrf.mxu0
        %v437 = vadd.f32 %v314, %v436
        %v438 = vpop.f32.mrf.mxu0
        %v439 = vadd.f32 %v314, %v438
        %440 = vmatmul.bf16.gmra.mxu0 %v352
        %v441 = vpop.f32.mrf.mxu0
        %v442 = vadd.f32 %v314, %v441
        %v443 = vpop.f32.mrf.mxu0
        %v444 = vadd.f32 %v314, %v443
        %445 = vmatmul.bf16.gmra.mxu0 %v353
        %v446 = vpop.f32.mrf.mxu0
        %v447 = vadd.f32 %v314, %v446
        %v448 = vpop.f32.mrf.mxu0
        %v449 = vadd.f32 %v314, %v448
        %450 = vmatmul.bf16.gmra.mxu0 %v354
        %v451 = vpop.f32.mrf.mxu0
        %v452 = vadd.f32 %v314, %v451
        %v453 = vpop.f32.mrf.mxu0
        %v454 = vadd.f32 %v314, %v453
        %455 = vmatmul.bf16.gmra.mxu0 %v355
        %v456 = vpop.f32.mrf.mxu0
        %v457 = vadd.f32 %v314, %v456
        %v458 = vpop.f32.mrf.mxu0
        %v459 = vadd.f32 %v314, %v458
        %460 = vdwg.mxu0
        %v461 = vmul.f32 %v422, 0.5
        %v462 = vmul.f32 %v424, 0.5
        %v463 = vmul.f32 %v427, 0.5
        %v464 = vmul.f32 %v429, 0.5
        %v465 = vmul.f32 %v432, 0.5
        %v466 = vmul.f32 %v434, 0.5
        %v467 = vmul.f32 %v437, 0.5
        %v468 = vmul.f32 %v439, 0.5
        %v469 = vmul.f32 %v442, 0.5
        %v470 = vmul.f32 %v444, 0.5
        %v471 = vmul.f32 %v447, 0.5
        %v472 = vmul.f32 %v449, 0.5
        %v473 = vmul.f32 %v452, 0.5
        %v474 = vmul.f32 %v454, 0.5
        %v475 = vmul.f32 %v457, 0.5
        %v476 = vmul.f32 %v459, 0.5
        %v477 = vmul.f32 %v422, 0.044715
        %v478 = vmul.f32 %v424, 0.044715
        %v479 = vmul.f32 %v427, 0.044715
        %v480 = vmul.f32 %v429, 0.044715
        %v481 = vmul.f32 %v432, 0.044715
        %v482 = vmul.f32 %v434, 0.044715
        %v483 = vmul.f32 %v437, 0.044715
        %v484 = vmul.f32 %v439, 0.044715
        %v485 = vmul.f32 %v442, 0.044715
        %v486 = vmul.f32 %v444, 0.044715
        %v487 = vmul.f32 %v447, 0.044715
        %v488 = vmul.f32 %v449, 0.044715
        %v489 = vmul.f32 %v452, 0.044715
        %v490 = vmul.f32 %v454, 0.044715
        %v491 = vmul.f32 %v457, 0.044715
        %v492 = vmul.f32 %v459, 0.044715
        %v493 = vmul.f32 %v477, %v422
        %v494 = vmul.f32 %v478, %v424
        %v495 = vmul.f32 %v479, %v427
        %v496 = vmul.f32 %v480, %v429
        %v497 = vmul.f32 %v481, %v432
        %v498 = vmul.f32 %v482, %v434
        %v499 = vmul.f32 %v483, %v437
        %v500 = vmul.f32 %v484, %v439
        %v501 = vmul.f32 %v485, %v442
        %v502 = vmul.f32 %v486, %v444
        %v503 = vmul.f32 %v487, %v447
        %v504 = vmul.f32 %v488, %v449
        %v505 = vmul.f32 %v489, %v452
        %v506 = vmul.f32 %v490, %v454
        %v507 = vmul.f32 %v491, %v457
        %v508 = vmul.f32 %v492, %v459
        %v509 = vmul.f32 %v493, %v422
        %v510 = vmul.f32 %v494, %v424
        %v511 = vmul.f32 %v495, %v427
        %v512 = vmul.f32 %v496, %v429
        %v513 = vmul.f32 %v497, %v432
        %v514 = vmul.f32 %v498, %v434
        %v515 = vmul.f32 %v499, %v437
        %v516 = vmul.f32 %v500, %v439
        %v517 = vmul.f32 %v501, %v442
        %v518 = vmul.f32 %v502, %v444
        %v519 = vmul.f32 %v503, %v447
        %v520 = vmul.f32 %v504, %v449
        %v521 = vmul.f32 %v505, %v452
        %v522 = vmul.f32 %v506, %v454
        %v523 = vmul.f32 %v507, %v457
        %v524 = vmul.f32 %v508, %v459
        %v525 = vadd.f32 %v422, %v509
        %v526 = vadd.f32 %v424, %v510
        %v527 = vadd.f32 %v427, %v511
        %v528 = vadd.f32 %v429, %v512
        %v529 = vadd.f32 %v432, %v513
        %v530 = vadd.f32 %v434, %v514
        %v531 = vadd.f32 %v437, %v515
        %v532 = vadd.f32 %v439, %v516
        %v533 = vadd.f32 %v442, %v517
        %v534 = vadd.f32 %v444, %v518
        %v535 = vadd.f32 %v447, %v519
        %v536 = vadd.f32 %v449, %v520
        %v537 = vadd.f32 %v452, %v521
        %v538 = vadd.f32 %v454, %v522
        %v539 = vadd.f32 %v457, %v523
        %v540 = vadd.f32 %v459, %v524
        %v541 = vmul.f32 %v525, 0.7978846
        %v542 = vmul.f32 %v526, 0.7978846
        %v543 = vmul.f32 %v527, 0.7978846
        %v544 = vmul.f32 %v528, 0.7978846
        %v545 = vmul.f32 %v529, 0.7978846
        %v546 = vmul.f32 %v530, 0.7978846
        %v547 = vmul.f32 %v531, 0.7978846
        %v548 = vmul.f32 %v532, 0.7978846
        %v549 = vmul.f32 %v533, 0.7978846
        %v550 = vmul.f32 %v534, 0.7978846
        %v551 = vmul.f32 %v535, 0.7978846
        %v552 = vmul.f32 %v536, 0.7978846
        %v553 = vmul.f32 %v537, 0.7978846
        %v554 = vmul.f32 %v538, 0.7978846
        %v555 = vmul.f32 %v539, 0.7978846
        %v556 = vmul.f32 %v540, 0.7978846
        %v557 = vtanh.pop %v541
        %v558 = vtanh.pop %v542
        %v559 = vtanh.pop %v543
        %v560 = vtanh.pop %v544
        %v561 = vtanh.pop %v545
        %v562 = vtanh.pop %v546
        %v563 = vtanh.pop %v547
        %v564 = vtanh.pop %v548
        %v565 = vtanh.pop %v549
        %v566 = vtanh.pop %v550
        %v567 = vtanh.pop %v551
        %v568 = vtanh.pop %v552
        %v569 = vtanh.pop %v553
        %v570 = vtanh.pop %v554
        %v571 = vtanh.pop %v555
        %v572 = vtanh.pop %v556
        %v573 = vadd.f32 %v557, 1.0
        %v574 = vadd.f32 %v558, 1.0
        %v575 = vadd.f32 %v559, 1.0
        %v576 = vadd.f32 %v560, 1.0
        %v577 = vadd.f32 %v561, 1.0
        %v578 = vadd.f32 %v562, 1.0
        %v579 = vadd.f32 %v563, 1.0
        %v580 = vadd.f32 %v564, 1.0
        %v581 = vadd.f32 %v565, 1.0
        %v582 = vadd.f32 %v566, 1.0
        %v583 = vadd.f32 %v567, 1.0
        %v584 = vadd.f32 %v568, 1.0
        %v585 = vadd.f32 %v569, 1.0
        %v586 = vadd.f32 %v570, 1.0
        %v587 = vadd.f32 %v571, 1.0
        %v588 = vadd.f32 %v572, 1.0
        %v589 = vmul.f32 %v461, %v573
        %v590 = vmul.f32 %v462, %v574
        %v591 = vmul.f32 %v463, %v575
        %v592 = vmul.f32 %v464, %v576
        %v593 = vmul.f32 %v465, %v577
        %v594 = vmul.f32 %v466, %v578
        %v595 = vmul.f32 %v467, %v579
        %v596 = vmul.f32 %v468, %v580
        %v597 = vmul.f32 %v469, %v581
        %v598 = vmul.f32 %v470, %v582
        %v599 = vmul.f32 %v471, %v583
        %v600 = vmul.f32 %v472, %v584
        %v601 = vmul.f32 %v473, %v585
        %v602 = vmul.f32 %v474, %v586
        %v603 = vmul.f32 %v475, %v587
        %v604 = vmul.f32 %v476, %v588
        %v605 = vpack.c.bf16 %v590, %v589
        %v606 = vpack.c.bf16 %v592, %v591
        %v607 = vpack.c.bf16 %v594, %v593
        %v608 = vpack.c.bf16 %v596, %v595
        %v609 = vpack.c.bf16 %v598, %v597
        %v610 = vpack.c.bf16 %v600, %v599
        %v611 = vpack.c.bf16 %v602, %v601
        %v612 = vpack.c.bf16 %v604, %v603
        %v613 = vld [vmem:[#allocation7] sm:$0xf]
        %v614 = vld [vmem:[#allocation7 + $0x4] sm:$0xf]
        %v615 = vld [vmem:[#allocation7 + $0x8] sm:$0xf]
        %v616 = vld [vmem:[#allocation7 + $0xc] sm:$0xf]
        %v617 = vld [vmem:[#allocation7 + $0x10] sm:$0xf]
        %v618 = vld [vmem:[#allocation7 + $0x14] sm:$0xf]
        %v619 = vld [vmem:[#allocation7 + $0x18] sm:$0xf]
        %v620 = vld [vmem:[#allocation7 + $0x1c] sm:$0xf]
        %v621 = vld [vmem:[#allocation7 + $0x20] sm:$0xf]
        %v622 = vld [vmem:[#allocation7 + $0x24] sm:$0xf]
        %v623 = vld [vmem:[#allocation7 + $0x28] sm:$0xf]
        %v624 = vld [vmem:[#allocation7 + $0x2c] sm:$0xf]
        %v625 = vld [vmem:[#allocation7 + $0x30] sm:$0xf]
        %v626 = vld [vmem:[#allocation7 + $0x34] sm:$0xf]
        %v627 = vld [vmem:[#allocation7 + $0x38] sm:$0xf]
        %v628 = vld [vmem:[#allocation7 + $0x3c] sm:$0xf]
        %v629 = vld [vmem:[%s4] sm:$0x1]
        %v631 = vperm.slane %v629, 0
        %v649 = vunpack.c.l.b16 %v613
        %v650 = vunpack.c.l.b16 %v614
        %v651 = vunpack.c.l.b16 %v615
        %v652 = vunpack.c.l.b16 %v616
        %v653 = vunpack.c.l.b16 %v617
        %v654 = vunpack.c.l.b16 %v618
        %v655 = vunpack.c.l.b16 %v619
        %v656 = vunpack.c.l.b16 %v620
        %v657 = vunpack.c.l.b16 %v621
        %v658 = vunpack.c.l.b16 %v622
        %v659 = vunpack.c.l.b16 %v623
        %v660 = vunpack.c.l.b16 %v624
        %v661 = vunpack.c.l.b16 %v625
        %v662 = vunpack.c.l.b16 %v626
        %v663 = vunpack.c.l.b16 %v627
        %v664 = vunpack.c.l.b16 %v628
        %v665 = vpack.c.b16 %v650, %v649
        %v666 = vpack.c.b16 %v652, %v651
        %v667 = vpack.c.b16 %v654, %v653
        %v668 = vpack.c.b16 %v656, %v655
        %v669 = vpack.c.b16 %v658, %v657
        %v670 = vpack.c.b16 %v660, %v659
        %v671 = vpack.c.b16 %v662, %v661
        %v672 = vpack.c.b16 %v664, %v663
        %681 = vmatpush.bf16.msra.mxu0 %v672
        %682 = vmatpush.bf16.msra.mxu0 %v671
        %683 = vmatpush.bf16.msra.mxu0 %v670
        %684 = vmatpush.bf16.msra.mxu0 %v669
        %685 = vmatpush.bf16.msra.mxu0 %v668
        %686 = vmatpush.bf16.msra.mxu0 %v667
        %687 = vmatpush.bf16.msra.mxu0 %v666
        %688 = vmatpush.bf16.msra.mxu0 %v665
        %689 = vmatmul.bf16.gmra.mxu0 %v605
        %v690 = vpop.f32.mrf.mxu0
        %v691 = vadd.f32 %v631, %v690
        %v692 = vpop.f32.mrf.mxu0
        %v693 = vadd.f32 %v631, %v692
        %694 = vmatmul.bf16.gmra.mxu0 %v606
        %v695 = vpop.f32.mrf.mxu0
        %v696 = vadd.f32 %v631, %v695
        %v697 = vpop.f32.mrf.mxu0
        %v698 = vadd.f32 %v631, %v697
        %699 = vmatmul.bf16.gmra.mxu0 %v607
        %v700 = vpop.f32.mrf.mxu0
        %v701 = vadd.f32 %v631, %v700
        %v702 = vpop.f32.mrf.mxu0
        %v703 = vadd.f32 %v631, %v702
        %704 = vmatmul.bf16.gmra.mxu0 %v608
        %v705 = vpop.f32.mrf.mxu0
        %v706 = vadd.f32 %v631, %v705
        %v707 = vpop.f32.mrf.mxu0
        %v708 = vadd.f32 %v631, %v707
        %709 = vmatmul.bf16.gmra.mxu0 %v609
        %v710 = vpop.f32.mrf.mxu0
        %v711 = vadd.f32 %v631, %v710
        %v712 = vpop.f32.mrf.mxu0
        %v713 = vadd.f32 %v631, %v712
        %714 = vmatmul.bf16.gmra.mxu0 %v610
        %v715 = vpop.f32.mrf.mxu0
        %v716 = vadd.f32 %v631, %v715
        %v717 = vpop.f32.mrf.mxu0
        %v718 = vadd.f32 %v631, %v717
        %719 = vmatmul.bf16.gmra.mxu0 %v611
        %v720 = vpop.f32.mrf.mxu0
        %v721 = vadd.f32 %v631, %v720
        %v722 = vpop.f32.mrf.mxu0
        %v723 = vadd.f32 %v631, %v722
        %724 = vmatmul.bf16.gmra.mxu0 %v612
        %v725 = vpop.f32.mrf.mxu0
        %v726 = vadd.f32 %v631, %v725
        %v727 = vpop.f32.mrf.mxu0
        %v728 = vadd.f32 %v631, %v727
        %729 = vdwg.mxu0
        %v730 = vmul.f32 %v691, %v691
        %v731 = vmul.f32 %v693, %v693
        %v732 = vmul.f32 %v696, %v696
        %v733 = vmul.f32 %v698, %v698
        %v734 = vmul.f32 %v701, %v701
        %v735 = vmul.f32 %v703, %v703
        %v736 = vmul.f32 %v706, %v706
        %v737 = vmul.f32 %v708, %v708
        %v738 = vmul.f32 %v711, %v711
        %v739 = vmul.f32 %v713, %v713
        %v740 = vmul.f32 %v716, %v716
        %v741 = vmul.f32 %v718, %v718
        %v742 = vmul.f32 %v721, %v721
        %v743 = vmul.f32 %v723, %v723
        %v744 = vmul.f32 %v726, %v726
        %v745 = vmul.f32 %v728, %v728
        %746 = vadd.xlane.f32.xlu0 %v730
        %v747 = vpop.xlane.xlu0 %746
        %748 = vadd.xlane.f32.xlu0 %v731
        %v749 = vpop.xlane.xlu0 %748
        %750 = vadd.xlane.f32.xlu0 %v732
        %v751 = vpop.xlane.xlu0 %750
        %752 = vadd.xlane.f32.xlu0 %v733
        %v753 = vpop.xlane.xlu0 %752
        %754 = vadd.xlane.f32.xlu0 %v734
        %v755 = vpop.xlane.xlu0 %754
        %756 = vadd.xlane.f32.xlu0 %v735
        %v757 = vpop.xlane.xlu0 %756
        %758 = vadd.xlane.f32.xlu0 %v736
        %v759 = vpop.xlane.xlu0 %758
        %760 = vadd.xlane.f32.xlu0 %v737
        %v761 = vpop.xlane.xlu0 %760
        %762 = vadd.xlane.f32.xlu0 %v738
        %v763 = vpop.xlane.xlu0 %762
        %764 = vadd.xlane.f32.xlu0 %v739
        %v765 = vpop.xlane.xlu0 %764
        %766 = vadd.xlane.f32.xlu0 %v740
        %v767 = vpop.xlane.xlu0 %766
        %768 = vadd.xlane.f32.xlu0 %v741
        %v769 = vpop.xlane.xlu0 %768
        %770 = vadd.xlane.f32.xlu0 %v742
        %v771 = vpop.xlane.xlu0 %770
        %772 = vadd.xlane.f32.xlu0 %v743
        %v773 = vpop.xlane.xlu0 %772
        %774 = vadd.xlane.f32.xlu0 %v744
        %v775 = vpop.xlane.xlu0 %774
        %776 = vadd.xlane.f32.xlu0 %v745
        %v777 = vpop.xlane.xlu0 %776
        %v778 = vadd.f32 %v747, 1e-12
        %v779 = vadd.f32 %v749, 1e-12
        %v780 = vadd.f32 %v751, 1e-12
        %v781 = vadd.f32 %v753, 1e-12
        %v782 = vadd.f32 %v755, 1e-12
        %v783 = vadd.f32 %v757, 1e-12
        %v784 = vadd.f32 %v759, 1e-12
        %v785 = vadd.f32 %v761, 1e-12
        %v786 = vadd.f32 %v763, 1e-12
        %v787 = vadd.f32 %v765, 1e-12
        %v788 = vadd.f32 %v767, 1e-12
        %v789 = vadd.f32 %v769, 1e-12
        %v790 = vadd.f32 %v771, 1e-12
        %v791 = vadd.f32 %v773, 1e-12
        %v792 = vadd.f32 %v775, 1e-12
        %v793 = vadd.f32 %v777, 1e-12
        %v794 = vrsqrt.pop %v778
        %v795 = vmul.f32 %v794, %v778
        %v796 = vmul.f32 %v795, %v794
        %v797 = vmul.f32 0.5, %v796
        %v798 = vsub.f32 1.5, %v797
        %v799 = vmul.f32 %v794, %v798
        %vm800 = vweird.f32 %v778
        %vm801 = vweird.f32 %v794
        %vm802 = vmor %vm800, %vm801
        %v803 = vsel %vm802, %v794, %v799
        %v804 = vrsqrt.pop %v779
        %v805 = vmul.f32 %v804, %v779
        %v806 = vmul.f32 %v805, %v804
        %v807 = vmul.f32 0.5, %v806
        %v808 = vsub.f32 1.5, %v807
        %v809 = vmul.f32 %v804, %v808
        %vm810 = vweird.f32 %v779
        %vm811 = vweird.f32 %v804
        %vm812 = vmor %vm810, %vm811
        %v813 = vsel %vm812, %v804, %v809
        %v814 = vrsqrt.pop %v780
        %v815 = vmul.f32 %v814, %v780
        %v816 = vmul.f32 %v815, %v814
        %v817 = vmul.f32 0.5, %v816
        %v818 = vsub.f32 1.5, %v817
        %v819 = vmul.f32 %v814, %v818
        %vm820 = vweird.f32 %v780
        %vm821 = vweird.f32 %v814
        %vm822 = vmor %vm820, %vm821
        %v823 = vsel %vm822, %v814, %v819
        %v824 = vrsqrt.pop %v781
        %v825 = vmul.f32 %v824, %v781
        %v826 = vmul.f32 %v825, %v824
        %v827 = vmul.f32 0.5, %v826
        %v828 = vsub.f32 1.5, %v827
        %v829 = vmul.f32 %v824, %v828
        %vm830 = vweird.f32 %v781
        %vm831 = vweird.f32 %v824
        %vm832 = vmor %vm830, %vm831
        %v833 = vsel %vm832, %v824, %v829
        %v834 = vrsqrt.pop %v782
        %v835 = vmul.f32 %v834, %v782
        %v836 = vmul.f32 %v835, %v834
        %v837 = vmul.f32 0.5, %v836
        %v838 = vsub.f32 1.5, %v837
        %v839 = vmul.f32 %v834, %v838
        %vm840 = vweird.f32 %v782
        %vm841 = vweird.f32 %v834
        %vm842 = vmor %vm840, %vm841
        %v843 = vsel %vm842, %v834, %v839
        %v844 = vrsqrt.pop %v783
        %v845 = vmul.f32 %v844, %v783
        %v846 = vmul.f32 %v845, %v844
        %v847 = vmul.f32 0.5, %v846
        %v848 = vsub.f32 1.5, %v847
        %v849 = vmul.f32 %v844, %v848
        %vm850 = vweird.f32 %v783
        %vm851 = vweird.f32 %v844
        %vm852 = vmor %vm850, %vm851
        %v853 = vsel %vm852, %v844, %v849
        %v854 = vrsqrt.pop %v784
        %v855 = vmul.f32 %v854, %v784
        %v856 = vmul.f32 %v855, %v854
        %v857 = vmul.f32 0.5, %v856
        %v858 = vsub.f32 1.5, %v857
        %v859 = vmul.f32 %v854, %v858
        %vm860 = vweird.f32 %v784
        %vm861 = vweird.f32 %v854
        %vm862 = vmor %vm860, %vm861
        %v863 = vsel %vm862, %v854, %v859
        %v864 = vrsqrt.pop %v785
        %v865 = vmul.f32 %v864, %v785
        %v866 = vmul.f32 %v865, %v864
        %v867 = vmul.f32 0.5, %v866
        %v868 = vsub.f32 1.5, %v867
        %v869 = vmul.f32 %v864, %v868
        %vm870 = vweird.f32 %v785
        %vm871 = vweird.f32 %v864
        %vm872 = vmor %vm870, %vm871
        %v873 = vsel %vm872, %v864, %v869
        %v874 = vrsqrt.pop %v786
        %v875 = vmul.f32 %v874, %v786
        %v876 = vmul.f32 %v875, %v874
        %v877 = vmul.f32 0.5, %v876
        %v878 = vsub.f32 1.5, %v877
        %v879 = vmul.f32 %v874, %v878
        %vm880 = vweird.f32 %v786
        %vm881 = vweird.f32 %v874
        %vm882 = vmor %vm880, %vm881
        %v883 = vsel %vm882, %v874, %v879
        %v884 = vrsqrt.pop %v787
        %v885 = vmul.f32 %v884, %v787
        %v886 = vmul.f32 %v885, %v884
        %v887 = vmul.f32 0.5, %v886
        %v888 = vsub.f32 1.5, %v887
        %v889 = vmul.f32 %v884, %v888
        %vm890 = vweird.f32 %v787
        %vm891 = vweird.f32 %v884
        %vm892 = vmor %vm890, %vm891
        %v893 = vsel %vm892, %v884, %v889
        %v894 = vrsqrt.pop %v788
        %v895 = vmul.f32 %v894, %v788
        %v896 = vmul.f32 %v895, %v894
        %v897 = vmul.f32 0.5, %v896
        %v898 = vsub.f32 1.5, %v897
        %v899 = vmul.f32 %v894, %v898
        %vm900 = vweird.f32 %v788
        %vm901 = vweird.f32 %v894
        %vm902 = vmor %vm900, %vm901
        %v903 = vsel %vm902, %v894, %v899
        %v904 = vrsqrt.pop %v789
        %v905 = vmul.f32 %v904, %v789
        %v906 = vmul.f32 %v905, %v904
        %v907 = vmul.f32 0.5, %v906
        %v908 = vsub.f32 1.5, %v907
        %v909 = vmul.f32 %v904, %v908
        %vm910 = vweird.f32 %v789
        %vm911 = vweird.f32 %v904
        %vm912 = vmor %vm910, %vm911
        %v913 = vsel %vm912, %v904, %v909
        %v914 = vrsqrt.pop %v790
        %v915 = vmul.f32 %v914, %v790
        %v916 = vmul.f32 %v915, %v914
        %v917 = vmul.f32 0.5, %v916
        %v918 = vsub.f32 1.5, %v917
        %v919 = vmul.f32 %v914, %v918
        %vm920 = vweird.f32 %v790
        %vm921 = vweird.f32 %v914
        %vm922 = vmor %vm920, %vm921
        %v923 = vsel %vm922, %v914, %v919
        %v924 = vrsqrt.pop %v791
        %v925 = vmul.f32 %v924, %v791
        %v926 = vmul.f32 %v925, %v924
        %v927 = vmul.f32 0.5, %v926
        %v928 = vsub.f32 1.5, %v927
        %v929 = vmul.f32 %v924, %v928
        %vm930 = vweird.f32 %v791
        %vm931 = vweird.f32 %v924
        %vm932 = vmor %vm930, %vm931
        %v933 = vsel %vm932, %v924, %v929
        %v934 = vrsqrt.pop %v792
        %v935 = vmul.f32 %v934, %v792
        %v936 = vmul.f32 %v935, %v934
        %v937 = vmul.f32 0.5, %v936
        %v938 = vsub.f32 1.5, %v937
        %v939 = vmul.f32 %v934, %v938
        %vm940 = vweird.f32 %v792
        %vm941 = vweird.f32 %v934
        %vm942 = vmor %vm940, %vm941
        %v943 = vsel %vm942, %v934, %v939
        %v944 = vrsqrt.pop %v793
        %v945 = vmul.f32 %v944, %v793
        %v946 = vmul.f32 %v945, %v944
        %v947 = vmul.f32 0.5, %v946
        %v948 = vsub.f32 1.5, %v947
        %v949 = vmul.f32 %v944, %v948
        %vm950 = vweird.f32 %v793
        %vm951 = vweird.f32 %v944
        %vm952 = vmor %vm950, %vm951
        %v953 = vsel %vm952, %v944, %v949
        %v954 = vmul.f32 %v691, %v803
        %v955 = vmul.f32 %v693, %v813
        %v956 = vmul.f32 %v696, %v823
        %v957 = vmul.f32 %v698, %v833
        %v958 = vmul.f32 %v701, %v843
        %v959 = vmul.f32 %v703, %v853
        %v960 = vmul.f32 %v706, %v863
        %v961 = vmul.f32 %v708, %v873
        %v962 = vmul.f32 %v711, %v883
        %v963 = vmul.f32 %v713, %v893
        %v964 = vmul.f32 %v716, %v903
        %v965 = vmul.f32 %v718, %v913
        %v966 = vmul.f32 %v721, %v923
        %v967 = vmul.f32 %v723, %v933
        %v968 = vmul.f32 %v726, %v943
        %v969 = vmul.f32 %v728, %v953
        %970 = vst [vmem:[%s277] sm:$0xff] %v954
        %971 = vst [vmem:[%s277 + $0x8] sm:$0xff] %v955
        %972 = vst [vmem:[%s277 + $0x10] sm:$0xff] %v956
        %973 = vst [vmem:[%s277 + $0x18] sm:$0xff] %v957
        %974 = vst [vmem:[%s277 + $0x20] sm:$0xff] %v958
        %975 = vst [vmem:[%s277 + $0x28] sm:$0xff] %v959
        %976 = vst [vmem:[%s277 + $0x30] sm:$0xff] %v960
        %977 = vst [vmem:[%s277 + $0x38] sm:$0xff] %v961
        %978 = vst [vmem:[%s277 + $0x40] sm:$0xff] %v962
        %979 = vst [vmem:[%s277 + $0x48] sm:$0xff] %v963
        %980 = vst [vmem:[%s277 + $0x50] sm:$0xff] %v964
        %981 = vst [vmem:[%s277 + $0x58] sm:$0xff] %v965
        %982 = vst [vmem:[%s277 + $0x60] sm:$0xff] %v966
        %983 = vst [vmem:[%s277 + $0x68] sm:$0xff] %v967
        %984 = vst [vmem:[%s277 + $0x70] sm:$0xff] %v968
        %985 = vst [vmem:[%s277 + $0x78] sm:$0xff] %v969
        %s986 = sand.u32 %s141, 1
        %s987 = scalar_lea.sflag [#allocation4], %s986
        %s988 = sand.u32 %s141, 1
        %s989 = smul.addr %s988, 128
        %s990 = scalar_lea.vmem [#allocation8], %s989
        // Predicated region
        $region53: #{tpu_custom_call.1} parent=39 // pred_check
          %p991 = pneg %p151
        $region54: #{tpu_custom_call.1} parent=39 // pred_check_branch
          %993 = sbr.rel (%p991) target = $region56
        $region55: #{tpu_custom_call.1} parent=39 // pred_region
          %s994 = smul.u32 16, %s23
          %996 = vsyncadd %s987, 0
          %s997 = smul.addr %s994, 8
          %s998 = scalar_lea.hbm %s5, %s997
          %s999 = sshll.u32 %s990, 4
          %s1000 = int_to_ptr.vmem [resolvable:$true] %s999
          %s1001 = sshll.u32 %s998, 4
          %s1002 = int_to_ptr.hbm [resolvable:$true] %s1001
          %1007 = dma.vmem_to_hbm [thread:$0]  %s1000, 2048, %s1002, %s987, 128, 128, 8
        $region56: #{tpu_custom_call.1} parent=39 // pred_fallthru
          _
      $region40: #{tpu_custom_call.1} parent=5 // pred_fallthru
        _
      %p1008 = scmp.le.s32.totalorder 2, %s18
      // Predicated region
      $region57: #{tpu_custom_call.1} parent=5 // pred_check
        %p1009 = pneg %p1008
      $region58: #{tpu_custom_call.1} parent=5 // pred_check_branch
        %1011 = sbr.rel (%p1009) target = $region60
      $region59: #{tpu_custom_call.1} parent=5 // pred_region
        %s1012 = ssub.s32 %s18, 2
        // Predicated region
        $region61: #{tpu_custom_call.1} parent=59 // pred_check
          %p1013 = pneg %p157
        $region62: #{tpu_custom_call.1} parent=59 // pred_check_branch
          %1015 = sbr.rel (%p1013) target = $region64
        $region63: #{tpu_custom_call.1} parent=59 // pred_region
          %s1016 = sand.u32 %s142, 1
          %s1017 = scalar_lea.sflag [#allocation4], %s1016
          %s1018 = sand.u32 %s142, 1
          %s1019 = smul.addr %s1018, 128
          %s1020 = scalar_lea.vmem [#allocation8], %s1019
          %1022 = dma.done %s1017, 2048
        $region64: #{tpu_custom_call.1} parent=59 // pred_fallthru
          _
      $region60: #{tpu_custom_call.1} parent=5 // pred_fallthru
        _
    $region6: #{tpu_custom_call.1} parent=1 // loop_footer
      %s22 = sadd.s32 1, %s18
    $region7: #{tpu_custom_call.1} parent=1 // loop_footer_branch
      %17 = sbr.rel target = $region3
    $region8: #{tpu_custom_call.1} parent=1 // loop_exit
      _
    %1023 = vsyncpa [#allocation3], 1
    %s1024 = scalar_lea.sflag [#allocation3], 1
    %1025 = vsyncpa %s1024, 1
    %1026 = vsyncpa [#allocation6], 1
    %1027 = vsyncpa [#allocation4], 1
    %s1028 = scalar_lea.sflag [#allocation4], 1
    %1029 = vsyncpa %s1028, 1

</llo_original>
